<compile_context>
chip_gen: v5e
topology: v5e:2x2
jax: 0.10.0
libtpu: 0.0.40
codegen_flags: <defaults>
</compile_context>

<pallas_src>
import jax
import jax.numpy as jnp
from jax.experimental import pallas as pl
from jax.experimental.pallas import tpu as pltpu


def _round_up(x, m):
    return ((x + m - 1) // m) * m


def _linear_kernel(x_ref, w_ref, b_ref, o_ref):
    # x_ref: (TM, Din) f32     w_ref: (Din, Dp) bf16 (resident across M tiles)
    # b_ref: (1, Dp)  f32      o_ref: (TM, Dp) out dtype
    x = x_ref[...].astype(jnp.bfloat16)           # in-kernel cast: halves x-side HBM traffic
    y = jnp.dot(x, w_ref[...], preferred_element_type=jnp.float32)
    o_ref[...] = (y + b_ref[...]).astype(o_ref.dtype)


def _single_linear(x2d, w, b, *, tm_target, out_dtype, vmem_cap_bytes):
    M, Din = x2d.shape
    Dp = w.shape[-1]

    # Divisor-aware TM (minimal last-tile waste); keep >=2 grid steps so both
    # v7x TensorCores get work whenever M allows it.
    if M <= 8:
        TM, tiles = M, 1                       # single full-extent block
    else:
        tiles = max(2, pl.cdiv(M, tm_target))
        TM = _round_up(pl.cdiv(M, tiles), 8)   # sublane-aligned
        tiles = pl.cdiv(M, TM)                 # partial last tile is masked by Pallas

    out_bytes = jnp.dtype(out_dtype).itemsize
    tile_bytes = (2 * TM * Din * 4             # double-buffered f32 x tile
                  + Din * Dp * 2               # resident bf16 weight
                  + 2 * TM * Dp * out_bytes    # double-buffered out tile
                  + Dp * 4)                    # bias
    vmem_limit = int(min(max(2 * tile_bytes + (4 << 20), 16 << 20), vmem_cap_bytes))

    cost = pl.CostEstimate(
        flops=2 * M * Din * Dp,
        transcendentals=0,
        bytes_accessed=M * Din * 4 + Din * Dp * 2 + Dp * 4 + M * Dp * out_bytes,
    )

    return pl.pallas_call(
        _linear_kernel,
        out_shape=jax.ShapeDtypeStruct((M, Dp), out_dtype),
        grid=(tiles,),
        in_specs=[
            pl.BlockSpec((TM, Din), lambda i: (i, 0)),
            pl.BlockSpec((Din, Dp), lambda i: (0, 0)),   # VMEM-resident across M tiles
            pl.BlockSpec((1, Dp), lambda i: (0, 0)),
        ],
        out_specs=pl.BlockSpec((TM, Dp), lambda i: (i, 0)),
        compiler_params=pltpu.CompilerParams(
            dimension_semantics=("parallel",),
            vmem_limit_bytes=vmem_limit),
        cost_estimate=cost,
    )(x2d, w, b)


def linear_layer_forward(tokens_list, weights, biases, *, tm_target=None,
                         out_dtype=None, vmem_cap_bytes=None):
    """Pallas equivalent of LinearLayer.forward.

    tokens_list: list of k arrays, each (B, N, dim_in), f32
    weights:     (k, dim_in, dim_out)  (transposed vs torch's (dim_out, dim_in))
    biases:      (k, dim_out)
    returns:     list of k arrays, each (B, N-1, dim_out)
    """
    k = len(tokens_list)
    B, N, Din = tokens_list[0].shape
    Dout = weights.shape[-1]
    out_dtype = tokens_list[0].dtype if out_dtype is None else out_dtype  # bf16 allowed if downstream accepts

    # Chip-adaptive defaults: smaller TM / tighter scoped-VMEM cap for v7x
    # (64 MiB physical VMEM), larger for v5e/v6e (128 MiB).
    if tm_target is None or vmem_cap_bytes is None:
        try:
            phys_vmem = int(getattr(pltpu.get_tpu_info(), "vmem_capacity_bytes",
                                    64 << 20))
        except Exception:
            phys_vmem = 64 << 20
        if tm_target is None:
            tm_target = 1024 if phys_vmem >= (96 << 20) else 512
        if vmem_cap_bytes is None:
            vmem_cap_bytes = (64 << 20) if phys_vmem >= (96 << 20) else (40 << 20)

    # Lane-dense output: pad weight/bias columns once to a multiple of 128
    # (cheap: params only); the extra zero columns are sliced off below.
    Dp = max(_round_up(Dout, 128), 128)
    w = weights.astype(jnp.bfloat16)
    b = biases.astype(jnp.float32)
    if Dp != Dout:
        w = jnp.pad(w, ((0, 0), (0, 0), (0, Dp - Dout)))
        b = jnp.pad(b, ((0, 0), (0, Dp - Dout)))
    b = b.reshape(k, 1, Dp)

    outs = []
    for i in range(k):
        # Read the original f32 tokens directly (reshape is a free view); run
        # the matmul over all N tokens and drop the class-token row plus any
        # padded columns with ONE fused slice on the output.
        x2d = tokens_list[i].reshape(B * N, Din)
        o2d = _single_linear(x2d, w[i], b[i], tm_target=tm_target,
                             out_dtype=out_dtype, vmem_cap_bytes=vmem_cap_bytes)
        outs.append(o2d.reshape(B, N, Dp)[:, 1:, :Dout])
    return outs


if __name__ == "__main__":
    # Small shapes consistent with the module:
    #   k = 2 linear layers, batch B = 2, N = 9 tokens (1 class + 8 patch),
    #   dim_in = 32, dim_out = 32.
    k, B, N, Din, Dout = 2, 2, 9, 32, 32

    key = jax.random.PRNGKey(0)
    keys = jax.random.split(key, 3 * k)

    # Deterministic synthetic params (mimics nn.Linear's uniform init range).
    bound = 1.0 / (Din ** 0.5)
    weights = jnp.stack([
        jax.random.uniform(keys[i], (Din, Dout), jnp.float32, -bound, bound)
        for i in range(k)
    ])                                                    # (k, Din, Dout)
    biases = jnp.stack([
        jax.random.uniform(keys[k + i], (Dout,), jnp.float32, -bound, bound)
        for i in range(k)
    ])                                                    # (k, Dout)
    tokens_list = [
        jax.random.normal(keys[2 * k + i], (B, N, Din), jnp.float32)
        for i in range(k)
    ]

    outs = linear_layer_forward(tokens_list, weights, biases)
    outs = [jax.block_until_ready(o) for o in outs]

    # Reference checks.
    for i in range(k):
        # Same bf16-input / f32-accumulate contraction in plain JAX.
        ref_bf16 = jnp.einsum(
            "bnd,de->bne",
            tokens_list[i][:, 1:, :].astype(jnp.bfloat16),
            weights[i].astype(jnp.bfloat16),
            preferred_element_type=jnp.float32) + biases[i]
        # Full-f32 math (looser tolerance accounts for bf16 input rounding).
        ref_f32 = jnp.einsum("bnd,de->bne",
                             tokens_list[i][:, 1:, :], weights[i]) + biases[i]
        out_f32 = outs[i].astype(jnp.float32)
        assert outs[i].shape == (B, N - 1, Dout)
        assert jnp.allclose(out_f32, ref_bf16, atol=2e-3, rtol=2e-3)
        assert jnp.allclose(out_f32, ref_f32, atol=5e-2, rtol=5e-2)

    print("KERNEL_OK")
</pallas_src>

<mosaic_0001>
module attributes {stable_mosaic.version = 11 : i64} {
  func.func @_linear_kernel(%arg0: i32, %arg1: memref<16x32xf32, #tpu.memory_space<vmem>>, %arg2: memref<32x128xbf16, #tpu.memory_space<vmem>>, %arg3: memref<1x128xf32, #tpu.memory_space<vmem>>, %arg4: memref<16x128xf32, #tpu.memory_space<vmem>>) attributes {dimension_semantics = [#tpu.dimension_semantics<parallel>], iteration_bounds = array<i64: 2>, scalar_prefetch = 0 : i64, scratch_operands = 0 : i64, tpu.core_type = #tpu.core_type<tc>, window_params = [{transform_indices = @transform_0, window_bounds = array<i64: 16, 32>}, {pipeline_mode = #tpu.pipeline_mode<synchronous>, transform_indices = @transform_1, window_bounds = array<i64: 32, 128>}, {pipeline_mode = #tpu.pipeline_mode<synchronous>, transform_indices = @transform_2, window_bounds = array<i64: 1, 128>}, {transform_indices = @transform_3, window_bounds = array<i64: 16, 128>}]} {
    %c0 = arith.constant 0 : index
    %c0_0 = arith.constant 0 : index
    %0 = vector.load %arg1[%c0, %c0_0] : memref<16x32xf32, #tpu.memory_space<vmem>>, vector<16x32xf32>
    %1 = arith.truncf %0 : vector<16x32xf32> to vector<16x32xbf16>
    %c0_1 = arith.constant 0 : index
    %c0_2 = arith.constant 0 : index
    %2 = vector.load %arg2[%c0_1, %c0_2] : memref<32x128xbf16, #tpu.memory_space<vmem>>, vector<32x128xbf16>
    %cst = arith.constant dense<0.000000e+00> : vector<16x128xf32>
    %3 = tpu.matmul %1, %2, %cst {dimension_numbers = #tpu.dot_dimension_numbers<[1], [0], [0], [1], [0, 0, 1, 1], [], []>} : vector<16x32xbf16>, vector<32x128xbf16>, vector<16x128xf32> -> vector<16x128xf32>
    %c0_3 = arith.constant 0 : index
    %c0_4 = arith.constant 0 : index
    %4 = vector.load %arg3[%c0_3, %c0_4] : memref<1x128xf32, #tpu.memory_space<vmem>>, vector<1x128xf32>
    %5 = vector.broadcast %4 : vector<1x128xf32> to vector<16x128xf32>
    %6 = arith.addf %3, %5 : vector<16x128xf32>
    %c0_5 = arith.constant 0 : index
    %c0_6 = arith.constant 0 : index
    %7 = vector.load %arg4[%c0_5, %c0_6] : memref<16x128xf32, #tpu.memory_space<vmem>>, vector<16x128xf32>
    tpu.vector_store %arg4[%c0_5, %c0_6], %6 {strides = array<i32>} : memref<16x128xf32, #tpu.memory_space<vmem>>, vector<16x128xf32>,
    return
  }
  func.func @transform_0(%arg0: i32) -> (i32, i32) {
    %c0_i32 = arith.constant 0 : i32
    %c0_i32_0 = arith.constant 0 : i32
    return %arg0, %c0_i32 : i32, i32
  }
  func.func @transform_1(%arg0: i32) -> (i32, i32) {
    %c0_i32 = arith.constant 0 : i32
    %c0_i32_0 = arith.constant 0 : i32
    %c0_i32_1 = arith.constant 0 : i32
    return %c0_i32, %c0_i32_0 : i32, i32
  }
  func.func @transform_2(%arg0: i32) -> (i32, i32) {
    %c0_i32 = arith.constant 0 : i32
    %c0_i32_0 = arith.constant 0 : i32
    %c0_i32_1 = arith.constant 0 : i32
    return %c0_i32, %c0_i32_0 : i32, i32
  }
  func.func @transform_3(%arg0: i32) -> (i32, i32) {
    %c0_i32 = arith.constant 0 : i32
    %c0_i32_0 = arith.constant 0 : i32
    return %arg0, %c0_i32 : i32, i32
  }
}

</mosaic_0001>

<llo_original>
// kernel: tpu_custom_call.1
$region0: #{tpu_custom_call.1}
  #allocation0 [shape = 'u32[]', space=smem, size = 0x4, offset = 0x4, fixed_abs, tag = 'smem constant byte address 0x4 - core index']
  #allocation1 [shape = 'u32[72,128]{1,0:T(1,128)}', space=vmem, size = 0x9000, scoped, tag = 'internal scratch']
  %s0 = inlined_call_operand.hbm [shape: f32[18,32], index: 0, kind: input, shape index: {}]
  %s1 = inlined_call_operand.hbm [shape: bf16[32,128], index: 1, kind: input, shape index: {}]
  %s2 = inlined_call_operand.vmem [shape: f32[1,128], index: 2, kind: input, shape index: {}]
  %s3 = inlined_call_operand.hbm [shape: f32[18,128], index: 3, kind: output, shape index: {}]
  %s4 = sld [smem:[#allocation0]]
  $region53: #{tpu_custom_call.1} parent=0
    _
  %s6 = ssub.s32 1, %s4
  %s7 = scalar_select 0, %s6, %s4
  $region1: #{tpu_custom_call.1} parent=0
    #allocation2 [shape = 'u8[16384]{0}', space=vmem, size = 0x4000, scoped, tag = 'input window, operand 0']
    #allocation3 [shape = 's32[2]{0}', space=sflag, size = 0x8, scoped, tag = 'scoped memory for tpu_custom_call.1']
    #allocation4 [shape = 's32[2]{0}', space=sflag, size = 0x8, scoped, tag = 'scoped memory for tpu_custom_call.1']
    #allocation5 [shape = 'u8[8192]{0}', space=vmem, size = 0x2000, scoped, tag = 'input window, operand 1, single buffered']
    #allocation6 [shape = 's32[1]{0}', space=sflag, size = 0x4, scoped, tag = 'scoped memory for tpu_custom_call.1']
    #allocation7 [shape = 'u8[16384]{0}', space=vmem, size = 0x4000, scoped, tag = 'output window, operand 0']
    %8 = vsyncpa [#allocation3], 0
    %s9 = scalar_lea.sflag [#allocation3], 1
    %10 = vsyncpa %s9, 0
    %11 = vsyncpa [#allocation6], 0
    %12 = vsyncpa [#allocation4], 0
    %s13 = scalar_lea.sflag [#allocation4], 1
    %14 = vsyncpa %s13, 0
    loop: start=0, step=1, limit=4
    $region2: #{tpu_custom_call.1} parent=1 // loop_pre_header
      _
    $region3: #{tpu_custom_call.1} parent=1 // loop_header
      %s16 = sphi 0, %s20
      %p17 = scmp.ge.s32.totalorder %s16, 4
      %s26 = sphi 0, %s28
      %s29 = sphi 0, %s26
      %s30 = sphi 0, %s29
      %s46 = sphi 0, %s30
      %s50 = sphi 0, %s50
      %s52 = sphi 0, %s50
      %s53 = sphi 0, %s52
      %s67 = sphi 0, %s53
      %s71 = sphi 0, %s71
      %s73 = sphi 0, %s71
      %s74 = sphi 0, %s73
      %s88 = sphi 0, %s74
      %s94 = sphi 0, %s96
      %s97 = sphi 0, %s94
      %s98 = sphi 0, %s97
      %s114 = sphi 0, %s98
    $region4: #{tpu_custom_call.1} parent=1 // loop_header_branch
      %19 = sbr.rel (%p17) target = $region8
    $region5: #{tpu_custom_call.1} parent=1 // loop_body
      %s21 = ssub.s32 %s16, 1
      %s22 = ssub.s32 %s16, 2
      %s23 = sadd.s32 %s16, 1
      %s24 = ssub.s32 %s16, %s23
      %p25 = scmp.eq.s32.totalorder %s24, 0
      %s27 = sadd.s32 %s26, 1
      %s28 = scalar_select %p25, %s26, %s27
      %p31 = pneg %p25
      %p32 = scmp.eq.s32.totalorder %s16, 1
      %p33 = por %p31, %p32
      %p34 = scmp.ne.s32.totalorder %s26, %s29
      %p35 = scmp.eq.s32.totalorder %s16, 0
      %p36 = por %p34, %p35
      %p37 = scmp.ne.s32.totalorder %s26, %s29
      %p38 = scmp.eq.s32.totalorder %s21, 1
      %p39 = por %p37, %p38
      %p40 = scmp.ne.s32.totalorder %s29, %s30
      %p41 = scmp.eq.s32.totalorder %s21, 0
      %p42 = por %p40, %p41
      %p43 = scmp.ne.s32.totalorder %s29, %s30
      %p44 = scmp.eq.s32.totalorder %s22, 1
      %p45 = por %p43, %p44
      %p47 = scmp.ne.s32.totalorder %s30, %s46
      %p48 = scmp.eq.s32.totalorder %s22, 0
      %p49 = por %p47, %p48
      %s51 = sadd.s32 %s50, 1
      %p54 = scmp.eq.s32.totalorder %s16, 1
      %p55 = scmp.ne.s32.totalorder %s50, %s52
      %p56 = scmp.eq.s32.totalorder %s16, 0
      %p57 = por %p55, %p56
      %p58 = scmp.ne.s32.totalorder %s50, %s52
      %p59 = scmp.eq.s32.totalorder %s21, 1
      %p60 = por %p58, %p59
      %p61 = scmp.ne.s32.totalorder %s52, %s53
      %p62 = scmp.eq.s32.totalorder %s21, 0
      %p63 = por %p61, %p62
      %p64 = scmp.ne.s32.totalorder %s52, %s53
      %p65 = scmp.eq.s32.totalorder %s22, 1
      %p66 = por %p64, %p65
      %p68 = scmp.ne.s32.totalorder %s53, %s67
      %p69 = scmp.eq.s32.totalorder %s22, 0
      %p70 = por %p68, %p69
      %s72 = sadd.s32 %s71, 1
      %p75 = scmp.eq.s32.totalorder %s16, 1
      %p76 = scmp.ne.s32.totalorder %s71, %s73
      %p77 = scmp.eq.s32.totalorder %s16, 0
      %p78 = por %p76, %p77
      %p79 = scmp.ne.s32.totalorder %s71, %s73
      %p80 = scmp.eq.s32.totalorder %s21, 1
      %p81 = por %p79, %p80
      %p82 = scmp.ne.s32.totalorder %s73, %s74
      %p83 = scmp.eq.s32.totalorder %s21, 0
      %p84 = por %p82, %p83
      %p85 = scmp.ne.s32.totalorder %s73, %s74
      %p86 = scmp.eq.s32.totalorder %s22, 1
      %p87 = por %p85, %p86
      %p89 = scmp.ne.s32.totalorder %s74, %s88
      %p90 = scmp.eq.s32.totalorder %s22, 0
      %p91 = por %p89, %p90
      %s92 = ssub.s32 %s16, %s23
      %p93 = scmp.eq.s32.totalorder %s92, 0
      %s95 = sadd.s32 %s94, 1
      %s96 = scalar_select %p93, %s94, %s95
      %p99 = pneg %p93
      %p100 = scmp.eq.s32.totalorder %s16, 1
      %p101 = por %p99, %p100
      %p102 = scmp.ne.s32.totalorder %s94, %s97
      %p103 = scmp.eq.s32.totalorder %s16, 0
      %p104 = por %p102, %p103
      %p105 = scmp.ne.s32.totalorder %s94, %s97
      %p106 = scmp.eq.s32.totalorder %s21, 1
      %p107 = por %p105, %p106
      %p108 = scmp.ne.s32.totalorder %s97, %s98
      %p109 = scmp.eq.s32.totalorder %s21, 0
      %p110 = por %p108, %p109
      %p111 = scmp.ne.s32.totalorder %s97, %s98
      %p112 = scmp.eq.s32.totalorder %s22, 1
      %p113 = por %p111, %p112
      %p115 = scmp.ne.s32.totalorder %s98, %s114
      %p116 = scmp.eq.s32.totalorder %s22, 0
      %p117 = por %p115, %p116
      %p118 = scmp.le.s32.totalorder 1, %s16
      %p119 = scmp.lt.s32.totalorder %s16, 3
      %p120 = pnand %p118, %p119
      %p121 = pneg %p120
      // Predicated region
      $region9: #{tpu_custom_call.1} parent=5 // pred_check
        _
      $region10: #{tpu_custom_call.1} parent=5 // pred_check_branch
        %123 = sbr.rel (%p120) target = $region12
      $region11: #{tpu_custom_call.1} parent=5 // pred_region
        %s124 = ssub.s32 %s16, 1
        // Predicated region
        $region13: #{tpu_custom_call.1} parent=11 // pred_check
          %p125 = pneg %p63
        $region14: #{tpu_custom_call.1} parent=11 // pred_check_branch
          %127 = sbr.rel (%p125) target = $region16
        $region15: #{tpu_custom_call.1} parent=11 // pred_region
          %129 = vsyncadd [#allocation6], 0
          %s130 = sshll.u32 %s1, 4
          %s131 = int_to_ptr.hbm [resolvable:$true] %s130
          %s132 = sshll.u32 [#allocation5], 4
          %s133 = int_to_ptr.vmem [resolvable:$true] %s132
          %138 = dma.hbm_to_vmem [thread:$0]  %s131, 256, %s133, [#allocation6], 64, 64, 4
        $region16: #{tpu_custom_call.1} parent=11 // pred_fallthru
          _
        // Predicated region
        $region17: #{tpu_custom_call.1} parent=11 // pred_check
          %p139 = pneg %p84
        $region18: #{tpu_custom_call.1} parent=11 // pred_check_branch
          %141 = sbr.rel (%p139) target = $region20
        $region19: #{tpu_custom_call.1} parent=11 // pred_region
          _
        $region20: #{tpu_custom_call.1} parent=11 // pred_fallthru
          _
      $region12: #{tpu_custom_call.1} parent=5 // pred_fallthru
        _
      %p142 = scmp.lt.s32.totalorder %s16, 2
      // Predicated region
      $region21: #{tpu_custom_call.1} parent=5 // pred_check
        %p143 = pneg %p142
      $region22: #{tpu_custom_call.1} parent=5 // pred_check_branch
        %145 = sbr.rel (%p143) target = $region24
      $region23: #{tpu_custom_call.1} parent=5 // pred_region
        // Predicated region
        $region25: #{tpu_custom_call.1} parent=23 // pred_check
          %p146 = pneg %p36
        $region26: #{tpu_custom_call.1} parent=23 // pred_check_branch
          %148 = sbr.rel (%p146) target = $region28
        $region27: #{tpu_custom_call.1} parent=23 // pred_region
          %s149 = sand.u32 %s26, 1
          %s150 = scalar_lea.sflag [#allocation3], %s149
          %s151 = sand.u32 %s26, 1
          %s152 = smul.addr %s151, 16
          %s153 = scalar_lea.vmem [#allocation2], %s152
          %s154 = smul.u32 2, %s16
          %s155 = ssub.s32 3, %s154
          %p156 = scmp.lt.s32.totalorder %s155, 2
          %s157 = scalar_select %p156, %s155, 2
          %s158 = smul.u32 8, %s157
          %s159 = ssub.s32 16, %s158
          %s160 = sshll.u32 %s159, 4
          %161 = vsyncadd %s150, %s160
          %p162 = scmp.ne.s32.totalorder 0, %s158
          %s163 = smul.addr %s154, 8
          %s164 = scalar_lea.hbm %s0, %s163
          %s165 = smul.u32 8, %s157
          %s166 = sshll.u32 %s164, 4
          %s167 = int_to_ptr.hbm [resolvable:$true] %s166
          %s168 = sshll.u32 %s153, 4
          %s169 = int_to_ptr.vmem [resolvable:$true] %s168
          %s170 = sshll.u32 %s165, 4
          %174 = dma.hbm_to_vmem [thread:$0]  (%p162), %s167, %s170, %s169, %s150, 128, 128, 8
        $region28: #{tpu_custom_call.1} parent=23 // pred_fallthru
          _
      $region24: #{tpu_custom_call.1} parent=5 // pred_fallthru
        _
      %p175 = scmp.le.s32.totalorder 1, %s16
      %p176 = scmp.lt.s32.totalorder %s16, 3
      %p177 = pnand %p175, %p176
      %p178 = pneg %p177
      // Predicated region
      $region29: #{tpu_custom_call.1} parent=5 // pred_check
        _
      $region30: #{tpu_custom_call.1} parent=5 // pred_check_branch
        %180 = sbr.rel (%p177) target = $region32
      $region31: #{tpu_custom_call.1} parent=5 // pred_region
        %s181 = ssub.s32 %s16, 1
        %s182 = sand.u32 %s29, 1
        %s183 = scalar_lea.sflag [#allocation3], %s182
        %s184 = sand.u32 %s29, 1
        %s185 = smul.addr %s184, 16
        %s186 = scalar_lea.vmem [#allocation2], %s185
        // Predicated region
        $region33: #{tpu_custom_call.1} parent=31 // pred_check
          %p187 = pneg %p42
        $region34: #{tpu_custom_call.1} parent=31 // pred_check_branch
          %189 = sbr.rel (%p187) target = $region36
        $region35: #{tpu_custom_call.1} parent=31 // pred_region
          %191 = dma.done %s183, 256
        $region36: #{tpu_custom_call.1} parent=31 // pred_fallthru
          _
        // Predicated region
        $region37: #{tpu_custom_call.1} parent=31 // pred_check
          %p192 = pneg %p63
        $region38: #{tpu_custom_call.1} parent=31 // pred_check_branch
          %194 = sbr.rel (%p192) target = $region40
        $region39: #{tpu_custom_call.1} parent=31 // pred_region
          %196 = dma.done [#allocation6], 256
        $region40: #{tpu_custom_call.1} parent=31 // pred_fallthru
          _
        %s197 = sand.u32 %s29, 1
        %s198 = scalar_lea.sflag [#allocation3], %s197
        %s199 = sand.u32 %s29, 1
        %s200 = smul.addr %s199, 16
        %s201 = scalar_lea.vmem [#allocation2], %s200
        %p202 = pneg %p42
        %p203 = pneg %p39
        %p204 = pneg %p63
        %p205 = pneg %p60
        %p206 = pneg %p84
        %p207 = pneg %p81
        %p208 = pneg %p110
        %p209 = pneg %p107
        %s210 = sand.u32 %s97, 1
        %s211 = scalar_lea.sflag [#allocation4], %s210
        %s212 = sand.u32 %s97, 1
        %s213 = smul.addr %s212, 16
        %s214 = scalar_lea.vmem [#allocation7], %s213
        %s215 = smul.u32 2, %s21
        %s216 = ssub.s32 3, %s215
        %p217 = scmp.lt.s32.totalorder %s216, 2
        %s218 = scalar_select %p217, %s216, 2
        %s219 = smul.u32 8, %s218
        %s220 = smul.u32 2, %s21
        %s221 = ssub.s32 3, %s220
        %p222 = scmp.lt.s32.totalorder %s221, 2
        %s223 = scalar_select %p222, %s221, 2
        %s224 = smul.u32 8, %s223
        %v226 = vld [vmem:[%s186] sm:$0xff]
        %v227 = vld [vmem:[%s186 + $0x8] sm:$0xff]
        %v228 = vpack.c.bf16 %v227, %v226
        %v229 = vld [vmem:[#allocation5] sm:$0xf]
        %v230 = vld [vmem:[#allocation5 + $0x4] sm:$0xf]
        %v231 = vld [vmem:[#allocation5 + $0x8] sm:$0xf]
        %v232 = vld [vmem:[#allocation5 + $0xc] sm:$0xf]
        %v233 = vld [vmem:[%s2] sm:$0x1]
        %v235 = vperm.slane %v233, 0
        %v241 = vunpack.c.l.b16 %v229
        %v242 = vunpack.c.l.b16 %v230
        %v243 = vunpack.c.l.b16 %v231
        %v244 = vunpack.c.l.b16 %v232
        %v245 = vpack.c.b16 %v242, %v241
        %v246 = vpack.c.b16 %v244, %v243
        %vm249 = vcmask 261120
        %v251 = vsel %vm249, %v228, 0
        %253 = vmatpush.bf16.msra.mxu0 0
        %254 = vmatpush.bf16.msra.mxu0 0
        %255 = vmatpush.bf16.msra.mxu0 0
        %256 = vmatpush.bf16.msra.mxu0 0
        %257 = vmatpush.bf16.msra.mxu0 0
        %258 = vmatpush.bf16.msra.mxu0 0
        %259 = vmatpush.bf16.msra.mxu0 %v246
        %260 = vmatpush.bf16.msra.mxu0 %v245
        %261 = vmatmul.bf16.gmra.mxu0 %v251
        %v262 = vpop.f32.mrf.mxu0
        %v263 = vadd.f32 %v235, %v262
        %v264 = vpop.f32.mrf.mxu0
        %v265 = vadd.f32 %v235, %v264
        %266 = vdwg.mxu0
        %267 = vst [vmem:[%s214] sm:$0xff] %v263
        %268 = vst [vmem:[%s214 + $0x8] sm:$0xff] %v265
        %s269 = sand.u32 %s97, 1
        %s270 = scalar_lea.sflag [#allocation4], %s269
        %s271 = sand.u32 %s97, 1
        %s272 = smul.addr %s271, 16
        %s273 = scalar_lea.vmem [#allocation7], %s272
        // Predicated region
        $region41: #{tpu_custom_call.1} parent=31 // pred_check
          %p274 = pneg %p107
        $region42: #{tpu_custom_call.1} parent=31 // pred_check_branch
          %276 = sbr.rel (%p274) target = $region44
        $region43: #{tpu_custom_call.1} parent=31 // pred_region
          %s277 = smul.u32 2, %s21
          %s278 = ssub.s32 3, %s277
          %p279 = scmp.lt.s32.totalorder %s278, 2
          %s280 = scalar_select %p279, %s278, 2
          %s281 = smul.u32 8, %s280
          %s282 = ssub.s32 16, %s281
          %s283 = sshll.u32 %s282, 4
          %284 = vsyncadd %s270, %s283
          %p285 = scmp.ne.s32.totalorder 0, %s281
          %s286 = smul.addr %s277, 8
          %s287 = scalar_lea.hbm %s3, %s286
          %s288 = smul.u32 8, %s280
          %s289 = sshll.u32 %s273, 4
          %s290 = int_to_ptr.vmem [resolvable:$true] %s289
          %s291 = sshll.u32 %s287, 4
          %s292 = int_to_ptr.hbm [resolvable:$true] %s291
          %s293 = sshll.u32 %s288, 4
          %297 = dma.vmem_to_hbm [thread:$0]  (%p285), %s290, %s293, %s292, %s270, 128, 128, 8
        $region44: #{tpu_custom_call.1} parent=31 // pred_fallthru
          _
      $region32: #{tpu_custom_call.1} parent=5 // pred_fallthru
        _
      %p298 = scmp.le.s32.totalorder 2, %s16
      // Predicated region
      $region45: #{tpu_custom_call.1} parent=5 // pred_check
        %p299 = pneg %p298
      $region46: #{tpu_custom_call.1} parent=5 // pred_check_branch
        %301 = sbr.rel (%p299) target = $region48
      $region47: #{tpu_custom_call.1} parent=5 // pred_region
        %s302 = ssub.s32 %s16, 2
        // Predicated region
        $region49: #{tpu_custom_call.1} parent=47 // pred_check
          %p303 = pneg %p113
        $region50: #{tpu_custom_call.1} parent=47 // pred_check_branch
          %305 = sbr.rel (%p303) target = $region52
        $region51: #{tpu_custom_call.1} parent=47 // pred_region
          %s306 = sand.u32 %s98, 1
          %s307 = scalar_lea.sflag [#allocation4], %s306
          %s308 = sand.u32 %s98, 1
          %s309 = smul.addr %s308, 16
          %s310 = scalar_lea.vmem [#allocation7], %s309
          %312 = dma.done %s307, 256
        $region52: #{tpu_custom_call.1} parent=47 // pred_fallthru
          _
      $region48: #{tpu_custom_call.1} parent=5 // pred_fallthru
        _
    $region6: #{tpu_custom_call.1} parent=1 // loop_footer
      %s20 = sadd.s32 1, %s16
    $region7: #{tpu_custom_call.1} parent=1 // loop_footer_branch
      %15 = sbr.rel target = $region3
    $region8: #{tpu_custom_call.1} parent=1 // loop_exit
      _
    %313 = vsyncpa [#allocation3], 1
    %s314 = scalar_lea.sflag [#allocation3], 1
    %315 = vsyncpa %s314, 1
    %316 = vsyncpa [#allocation6], 1
    %317 = vsyncpa [#allocation4], 1
    %s318 = scalar_lea.sflag [#allocation4], 1
    %319 = vsyncpa %s318, 1

</llo_original>
